<compile_context>
chip_gen: v7x
topology: tpu7x:2x2x1
jax: 0.10.0
libtpu: 0.0.40
codegen_flags: <defaults>
</compile_context>

<pallas_src>
import functools

import jax
import jax.numpy as jnp
import numpy as np
from jax.experimental import pallas as pl
from jax.experimental.pallas import tpu as pltpu


# ----------------------------- Pallas kernel ------------------------------ #
def _gat_kernel(nbr_ref, rel_ref, emb_ref, pdiag_ref, wz_ref, wo_ref, bo_ref,
                o_ref, *, K, P, G, rows, bpb):
    """One grid step processes `bpb` batch elements folded into G = bpb*rows rows.

    nbr_ref  : (1, G, N)       bf16 neighbor weights, rows ordered (b, v, t, f)
    rel_ref  : (1, K*P*G, R)   bf16 relation weights, rows ordered (k, p, b, v, t, f)
    emb_ref  : (N, D)          bf16 embedding table
    pdiag_ref: (R, D)          bf16 stacked diag(W_r)
    wz_ref   : (1, D)          f32  z_j half of the attention Linear weight
    wo_ref   : (D, H)          bf16 output Linear weight (pre-scaled by 1/V)
    bo_ref   : (1, H)          f32  output Linear bias   (pre-scaled by 1/V)
    o_ref    : (1, bpb, H)     f32  per-step output block
    """
    f32 = jnp.float32

    # source embeddings, one row per (batch-in-step, v, t, f): (G,N)@(N,D).
    src = jnp.dot(nbr_ref[0], emb_ref[...], preferred_element_type=f32)      # (G, D)

    # all K*P per-path relation diagonals with ONE fused dot: (K*P*G,R)@(R,D).
    weff_all = jnp.dot(rel_ref[0], pdiag_ref[...],
                       preferred_element_type=f32)                           # (K*P*G, D)

    # attention logit for path p:  <w_eff_p * src, w_z>  ==  sum_d w_eff_p * (src*wz).
    # (h_time / bias terms are constant over p and cancel in the softmax.)
    sw = src * wz_ref[...]                                                   # (G, D)

    w_eff = []     # per-path effective diagonal, (G, D) each
    logits = []    # per-path logit column,       (G, 1) each
    for p in range(P):
        w_p = weff_all[p * G:(p + 1) * G]                    # k = 0 block
        for k in range(1, K):
            w_p = w_p * weff_all[(k * P + p) * G:(k * P + p + 1) * G]
        w_eff.append(w_p)
        logits.append(jnp.sum(w_p * sw, axis=-1, keepdims=True))

    # per-(v,t,f)-group softmax over paths: subtract the PER-GROUP max
    # (same as torch Softmax(dim=-1)), so denom >= 1 and 1/denom is safe.
    m = logits[0]
    for p in range(1, P):
        m = jnp.maximum(m, logits[p])
    e = [jnp.exp(l - m) for l in logits]                                     # (G, 1) each
    denom = e[0]
    for p in range(1, P):
        denom = denom + e[p]
    inv = pl.reciprocal(denom, approx=True)                                  # EUP, (G, 1)

    # z_agg = src * sum_p attn_p * w_eff_p   (distributivity over the path sum)
    wbar = e[0] * w_eff[0]
    for p in range(1, P):
        wbar = wbar + e[p] * w_eff[p]
    zagg = src * wbar * inv                                                  # (G, D)

    # output layer (Dropout is eval-mode identity) + ReLU; 1/V pre-folded.
    out_rows = jnp.maximum(
        jnp.dot(zagg.astype(jnp.bfloat16), wo_ref[...],
                preferred_element_type=f32) + bo_ref[...], 0.0)              # (G, H)

    # per-batch sum over its (v, t, f) rows == sum over (t, f) + mean over visits.
    pieces = [jnp.sum(out_rows[b * rows:(b + 1) * rows], axis=0, keepdims=True)
              for b in range(bpb)]
    result = pieces[0] if bpb == 1 else jnp.concatenate(pieces, axis=0)      # (bpb, H)
    o_ref[...] = result[None]


# ------------------------------- wrappers --------------------------------- #
def _tensorcores_per_device():
    """TCs fed by a 'parallel' grid axis on one device (best effort)."""
    try:
        kind = jax.devices()[0].device_kind.lower()
    except Exception:
        return 1
    # v4 / v5p megacore and v7x have 2 TensorCores per device; v5e/v6e have 1.
    return 2 if any(tag in kind for tag in ("v4", "v5p", "v7")) else 1


def gat_layer_forward(neighbor_index, rel_index, h_time, emb_w, layer):
    B, V, F, T, N = neighbor_index.shape
    _, _, _, _, P, K, R = rel_index.shape
    D = emb_w.shape[1]
    H = h_time.shape[-1]
    rows = V * T * F
    inv_v = 1.0 / V

    # One grid step per TensorCore if the batch splits evenly (v7x keeps both
    # cores busy); otherwise fold the whole batch into a single step
    # (v5e / v6e: no extra per-step overhead, bigger MXU M fill).
    tc = _tensorcores_per_device()
    n_steps = tc if (tc > 1 and B % tc == 0) else 1
    bpb = B // n_steps                  # batches folded per grid step
    G = bpb * rows                      # M rows per grid step

    # ---- layout plumbing (wrapper-side reshapes/transposes only) ----
    # neighbor rows ordered (batch-in-step, v, t, f); streamed in bf16.
    nbr = jnp.transpose(neighbor_index, (0, 1, 3, 2, 4)).reshape(n_steps, G, N)
    nbr = nbr.astype(jnp.bfloat16)
    # relation rows ordered (k, p, batch-in-step, v, t, f) so each (k, p)
    # factor is a contiguous, sublane-aligned (G, D) block of the fused dot.
    rel = jnp.transpose(rel_index, (5, 4, 0, 1, 3, 2, 6))        # (K,P,B,V,T,F,R)
    rel = rel.reshape(K, P, n_steps, G, R)
    rel = jnp.transpose(rel, (2, 0, 1, 3, 4)).reshape(n_steps, K * P * G, R)
    rel = rel.astype(jnp.bfloat16)

    pdiag = jnp.diagonal(layer["W"], axis1=1, axis2=2).astype(jnp.bfloat16)   # (R, D)
    emb_b = emb_w.astype(jnp.bfloat16)                                        # (N, D)
    wz = layer["attn_w"][:, H:]                                               # (1, D) f32
    wo = (jnp.transpose(layer["out_w"]) * inv_v).astype(jnp.bfloat16)         # (D, H)
    bo = layer["out_b"].reshape(1, H) * inv_v                                 # (1, H) f32

    kernel = functools.partial(_gat_kernel, K=K, P=P, G=G, rows=rows, bpb=bpb)
    zeros2 = lambda s: (0, 0)

    grid_spec = pltpu.PrefetchScalarGridSpec(
        num_scalar_prefetch=0,
        grid=(n_steps,),
        in_specs=[
            pl.BlockSpec((1, G, N), lambda s: (s, 0, 0)),
            pl.BlockSpec((1, K * P * G, R), lambda s: (s, 0, 0)),
            pl.BlockSpec((N, D), zeros2),
            pl.BlockSpec((R, D), zeros2),
            pl.BlockSpec((1, D), zeros2),
            pl.BlockSpec((D, H), zeros2),
            pl.BlockSpec((1, H), zeros2),
        ],
        out_specs=pl.BlockSpec((1, bpb, H), lambda s: (s, 0, 0)),
    )

    out = pl.pallas_call(
        kernel,
        out_shape=jax.ShapeDtypeStruct((n_steps, bpb, H), jnp.float32),
        grid_spec=grid_spec,
        compiler_params=pltpu.CompilerParams(
            dimension_semantics=("parallel",) if n_steps > 1 else ("arbitrary",)),
    )(nbr, rel, emb_b, pdiag, wz, wo, bo)
    return out.reshape(B, H)


def medpath_forward(params, neighbor_index, rel_index, h_time):
    # The PyTorch loop overwrites `output` every layer -> only the last GAT
    # layer contributes; earlier layers are skipped (identical result).
    layer = params["gat"][-1]
    return gat_layer_forward(neighbor_index, rel_index, h_time,
                             params["emb"], layer)


# --------------------------- parameter creation ---------------------------- #
def init_params(key, *, nfeat, hidden_dim, gat_hid, nrelation, gat_layers):
    D, H, R = hidden_dim, gat_hid, nrelation
    keys = jax.random.split(key, 1 + gat_layers)

    def xavier(k, shape, gain=1.0):
        a = gain * np.sqrt(6.0 / (shape[-1] + shape[-2]))
        return jax.random.uniform(k, shape, jnp.float32, -a, a)

    emb = xavier(keys[0], (nfeat, D))
    layers = []
    for l in range(gat_layers):
        k1, k2, k3, k4, k5 = jax.random.split(keys[1 + l], 5)
        W = xavier(k1, (R, D, D), gain=1.414)
        W = W.at[0].set(jnp.ones((D, D), jnp.float32))   # W[0] fixed to ones
        layers.append(dict(
            W=W,
            attn_w=xavier(k2, (1, D + H)),
            attn_b=jax.random.uniform(k3, (1,), jnp.float32, -0.1, 0.1),
            out_w=xavier(k4, (H, D)),
            out_b=jax.random.uniform(k5, (H,), jnp.float32, -0.1, 0.1),
        ))
    return dict(emb=emb, gat=layers)


# ---------------------------- pure-JAX reference --------------------------- #
def medpath_reference(params, neighbor_index, rel_index, h_time):
    emb = params["emb"]
    src = jnp.einsum("bvtmn,nd->bvtmd",
                     jnp.transpose(neighbor_index, (0, 1, 3, 2, 4)), emb)
    B, V, F, T, P, K, R = rel_index.shape
    D = emb.shape[1]
    H = h_time.shape[-1]
    out = None
    for layer in params["gat"]:
        pmat = layer["W"].reshape(R, -1)
        W = (rel_index.reshape(-1, R) @ pmat).reshape(B, V, F, T, P, K, D, D)
        W = jnp.prod(W, axis=-3)                                   # (B,V,F,T,P,D,D)
        z_j = jnp.einsum("bvtfpdd,bvtfd->bvtfpd",
                         jnp.transpose(W, (0, 1, 3, 2, 4, 5, 6)), src)
        s = jnp.broadcast_to(h_time[:, :, None, None, None, :], (B, V, T, F, P, H))
        cat = jnp.concatenate([s, z_j], axis=-1)
        attn = (cat @ layer["attn_w"].T)[..., 0] + layer["attn_b"][0]
        attn = jax.nn.softmax(attn, axis=-1)
        z_agg = jnp.einsum("bvtfp,bvtfpd->bvtfd", attn, z_j)
        o = jax.nn.relu(z_agg @ layer["out_w"].T + layer["out_b"])
        o = o.sum(axis=-2).sum(axis=-2)                            # (B, V, H)
        out = o.mean(axis=1)
    return out


# --------------------------------- main ------------------------------------ #
if __name__ == "__main__":
    B, V, T, F, P, K = 2, 2, 3, 4, 5, 2            # batch, visits, targets, feats, paths, K
    NFEAT, D, H, R, L = 16, 32, 16, 12, 2          # vocab, hidden, gat_hid, relations, layers

    key = jax.random.PRNGKey(0)
    kp, k1, k2, k3 = jax.random.split(key, 4)
    params = init_params(kp, nfeat=NFEAT, hidden_dim=D, gat_hid=H,
                         nrelation=R, gat_layers=L)

    neighbor_index = jax.random.uniform(k1, (B, V, F, T, NFEAT), jnp.float32)
    rel_index = jax.random.uniform(k2, (B, V, F, T, P, K, R), jnp.float32)
    h_time = jax.random.uniform(k3, (B, V, H), jnp.float32)

    out = medpath_forward(params, neighbor_index, rel_index, h_time)
    out = jax.block_until_ready(out)

    # Kernel runs bf16 MXU operands with f32 accumulation (per perf review);
    # 2e-2 is the standard bf16-vs-f32 comparison tolerance.
    ref = medpath_reference(params, neighbor_index, rel_index, h_time)
    np.testing.assert_allclose(np.asarray(out), np.asarray(ref),
                               rtol=2e-2, atol=2e-2)

    # TODO(synk): Dropout(p=0.3) is eval-mode identity; nn.GRU and the
    # Linear_x/i/y/linear/leakyrelu submodules are unused in forward().
    print("KERNEL_OK")
</pallas_src>

<mosaic_0001>
module attributes {stable_mosaic.version = 11 : i64} {
  func.func @_gat_kernel(%arg0: i32, %arg1: memref<1x48x16xbf16, #tpu.memory_space<vmem>>, %arg2: memref<1x480x12xbf16, #tpu.memory_space<vmem>>, %arg3: memref<16x32xbf16, #tpu.memory_space<vmem>>, %arg4: memref<12x32xbf16, #tpu.memory_space<vmem>>, %arg5: memref<1x32xf32, #tpu.memory_space<vmem>>, %arg6: memref<32x16xbf16, #tpu.memory_space<vmem>>, %arg7: memref<1x16xf32, #tpu.memory_space<vmem>>, %arg8: memref<1x2x16xf32, #tpu.memory_space<vmem>>) attributes {dimension_semantics = [#tpu.dimension_semantics<arbitrary>], iteration_bounds = array<i64: 1>, scalar_prefetch = 0 : i64, scratch_operands = 0 : i64, tpu.core_type = #tpu.core_type<tc>, window_params = [{transform_indices = @transform_0, window_bounds = array<i64: 1, 48, 16>}, {transform_indices = @transform_1, window_bounds = array<i64: 1, 480, 12>}, {pipeline_mode = #tpu.pipeline_mode<synchronous>, transform_indices = @transform_2, window_bounds = array<i64: 16, 32>}, {pipeline_mode = #tpu.pipeline_mode<synchronous>, transform_indices = @transform_3, window_bounds = array<i64: 12, 32>}, {pipeline_mode = #tpu.pipeline_mode<synchronous>, transform_indices = @transform_4, window_bounds = array<i64: 1, 32>}, {pipeline_mode = #tpu.pipeline_mode<synchronous>, transform_indices = @transform_5, window_bounds = array<i64: 32, 16>}, {pipeline_mode = #tpu.pipeline_mode<synchronous>, transform_indices = @transform_6, window_bounds = array<i64: 1, 16>}, {transform_indices = @transform_7, window_bounds = array<i64: 1, 2, 16>}]} {
    %c0 = arith.constant 0 : index
    %c0_0 = arith.constant 0 : index
    %c0_1 = arith.constant 0 : index
    %0 = vector.load %arg1[%c0, %c0_0, %c0_1] : memref<1x48x16xbf16, #tpu.memory_space<vmem>>, vector<1x48x16xbf16>
    %1 = vector.shape_cast %0 : vector<1x48x16xbf16> to vector<48x16xbf16>
    %c0_2 = arith.constant 0 : index
    %c0_3 = arith.constant 0 : index
    %2 = vector.load %arg3[%c0_2, %c0_3] : memref<16x32xbf16, #tpu.memory_space<vmem>>, vector<16x32xbf16>
    %cst = arith.constant dense<0.000000e+00> : vector<48x32xf32>
    %3 = tpu.matmul %1, %2, %cst {dimension_numbers = #tpu.dot_dimension_numbers<[1], [0], [0], [1], [0, 0, 1, 1], [], []>} : vector<48x16xbf16>, vector<16x32xbf16>, vector<48x32xf32> -> vector<48x32xf32>
    %c0_4 = arith.constant 0 : index
    %c0_5 = arith.constant 0 : index
    %c0_6 = arith.constant 0 : index
    %4 = vector.load %arg2[%c0_4, %c0_5, %c0_6] : memref<1x480x12xbf16, #tpu.memory_space<vmem>>, vector<1x480x12xbf16>
    %5 = vector.shape_cast %4 : vector<1x480x12xbf16> to vector<480x12xbf16>
    %c0_7 = arith.constant 0 : index
    %c0_8 = arith.constant 0 : index
    %6 = vector.load %arg4[%c0_7, %c0_8] : memref<12x32xbf16, #tpu.memory_space<vmem>>, vector<12x32xbf16>
    %cst_9 = arith.constant dense<0.000000e+00> : vector<480x32xf32>
    %7 = tpu.matmul %5, %6, %cst_9 {dimension_numbers = #tpu.dot_dimension_numbers<[1], [0], [0], [1], [0, 0, 1, 1], [], []>} : vector<480x12xbf16>, vector<12x32xbf16>, vector<480x32xf32> -> vector<480x32xf32>
    %c0_10 = arith.constant 0 : index
    %c0_11 = arith.constant 0 : index
    %8 = vector.load %arg5[%c0_10, %c0_11] : memref<1x32xf32, #tpu.memory_space<vmem>>, vector<1x32xf32>
    %9 = vector.broadcast %8 : vector<1x32xf32> to vector<48x32xf32>
    %10 = arith.mulf %3, %9 : vector<48x32xf32>
    %11 = vector.extract_strided_slice %7 {offsets = [0, 0], sizes = [48, 32], strides = [1, 1]} : vector<480x32xf32> to vector<48x32xf32>
    %12 = vector.extract_strided_slice %7 {offsets = [240, 0], sizes = [48, 32], strides = [1, 1]} : vector<480x32xf32> to vector<48x32xf32>
    %13 = arith.mulf %11, %12 : vector<48x32xf32>
    %14 = arith.mulf %13, %10 : vector<48x32xf32>
    %cst_12 = arith.constant dense<0.000000e+00> : vector<48xf32>
    %15 = vector.multi_reduction <add>, %14, %cst_12 [1] : vector<48x32xf32> to vector<48xf32>
    %16 = vector.shape_cast %15 : vector<48xf32> to vector<48x1xf32>
    %17 = vector.extract_strided_slice %7 {offsets = [48, 0], sizes = [48, 32], strides = [1, 1]} : vector<480x32xf32> to vector<48x32xf32>
    %18 = vector.extract_strided_slice %7 {offsets = [288, 0], sizes = [48, 32], strides = [1, 1]} : vector<480x32xf32> to vector<48x32xf32>
    %19 = arith.mulf %17, %18 : vector<48x32xf32>
    %20 = arith.mulf %19, %10 : vector<48x32xf32>
    %cst_13 = arith.constant dense<0.000000e+00> : vector<48xf32>
    %21 = vector.multi_reduction <add>, %20, %cst_13 [1] : vector<48x32xf32> to vector<48xf32>
    %22 = vector.shape_cast %21 : vector<48xf32> to vector<48x1xf32>
    %23 = vector.extract_strided_slice %7 {offsets = [96, 0], sizes = [48, 32], strides = [1, 1]} : vector<480x32xf32> to vector<48x32xf32>
    %24 = vector.extract_strided_slice %7 {offsets = [336, 0], sizes = [48, 32], strides = [1, 1]} : vector<480x32xf32> to vector<48x32xf32>
    %25 = arith.mulf %23, %24 : vector<48x32xf32>
    %26 = arith.mulf %25, %10 : vector<48x32xf32>
    %cst_14 = arith.constant dense<0.000000e+00> : vector<48xf32>
    %27 = vector.multi_reduction <add>, %26, %cst_14 [1] : vector<48x32xf32> to vector<48xf32>
    %28 = vector.shape_cast %27 : vector<48xf32> to vector<48x1xf32>
    %29 = vector.extract_strided_slice %7 {offsets = [144, 0], sizes = [48, 32], strides = [1, 1]} : vector<480x32xf32> to vector<48x32xf32>
    %30 = vector.extract_strided_slice %7 {offsets = [384, 0], sizes = [48, 32], strides = [1, 1]} : vector<480x32xf32> to vector<48x32xf32>
    %31 = arith.mulf %29, %30 : vector<48x32xf32>
    %32 = arith.mulf %31, %10 : vector<48x32xf32>
    %cst_15 = arith.constant dense<0.000000e+00> : vector<48xf32>
    %33 = vector.multi_reduction <add>, %32, %cst_15 [1] : vector<48x32xf32> to vector<48xf32>
    %34 = vector.shape_cast %33 : vector<48xf32> to vector<48x1xf32>
    %35 = vector.extract_strided_slice %7 {offsets = [192, 0], sizes = [48, 32], strides = [1, 1]} : vector<480x32xf32> to vector<48x32xf32>
    %36 = vector.extract_strided_slice %7 {offsets = [432, 0], sizes = [48, 32], strides = [1, 1]} : vector<480x32xf32> to vector<48x32xf32>
    %37 = arith.mulf %35, %36 : vector<48x32xf32>
    %38 = arith.mulf %37, %10 : vector<48x32xf32>
    %cst_16 = arith.constant dense<0.000000e+00> : vector<48xf32>
    %39 = vector.multi_reduction <add>, %38, %cst_16 [1] : vector<48x32xf32> to vector<48xf32>
    %40 = vector.shape_cast %39 : vector<48xf32> to vector<48x1xf32>
    %41 = arith.maximumf %16, %22 : vector<48x1xf32>
    %42 = arith.maximumf %41, %28 : vector<48x1xf32>
    %43 = arith.maximumf %42, %34 : vector<48x1xf32>
    %44 = arith.maximumf %43, %40 : vector<48x1xf32>
    %45 = arith.subf %16, %44 : vector<48x1xf32>
    %46 = math.exp %45 : vector<48x1xf32>
    %47 = arith.subf %22, %44 : vector<48x1xf32>
    %48 = math.exp %47 : vector<48x1xf32>
    %49 = arith.subf %28, %44 : vector<48x1xf32>
    %50 = math.exp %49 : vector<48x1xf32>
    %51 = arith.subf %34, %44 : vector<48x1xf32>
    %52 = math.exp %51 : vector<48x1xf32>
    %53 = arith.subf %40, %44 : vector<48x1xf32>
    %54 = math.exp %53 : vector<48x1xf32>
    %55 = arith.addf %46, %48 : vector<48x1xf32>
    %56 = arith.addf %55, %50 : vector<48x1xf32>
    %57 = arith.addf %56, %52 : vector<48x1xf32>
    %58 = arith.addf %57, %54 : vector<48x1xf32>
    %59 = tpu.reciprocal %58 {approx = true} : vector<48x1xf32> -> vector<48x1xf32>
    %60 = vector.broadcast %46 : vector<48x1xf32> to vector<48x32xf32>
    %61 = arith.mulf %60, %13 : vector<48x32xf32>
    %62 = vector.broadcast %48 : vector<48x1xf32> to vector<48x32xf32>
    %63 = arith.mulf %62, %19 : vector<48x32xf32>
    %64 = arith.addf %61, %63 : vector<48x32xf32>
    %65 = vector.broadcast %50 : vector<48x1xf32> to vector<48x32xf32>
    %66 = arith.mulf %65, %25 : vector<48x32xf32>
    %67 = arith.addf %64, %66 : vector<48x32xf32>
    %68 = vector.broadcast %52 : vector<48x1xf32> to vector<48x32xf32>
    %69 = arith.mulf %68, %31 : vector<48x32xf32>
    %70 = arith.addf %67, %69 : vector<48x32xf32>
    %71 = vector.broadcast %54 : vector<48x1xf32> to vector<48x32xf32>
    %72 = arith.mulf %71, %37 : vector<48x32xf32>
    %73 = arith.addf %70, %72 : vector<48x32xf32>
    %74 = arith.mulf %3, %73 : vector<48x32xf32>
    %75 = vector.broadcast %59 : vector<48x1xf32> to vector<48x32xf32>
    %76 = arith.mulf %74, %75 : vector<48x32xf32>
    %77 = arith.truncf %76 : vector<48x32xf32> to vector<48x32xbf16>
    %c0_17 = arith.constant 0 : index
    %c0_18 = arith.constant 0 : index
    %78 = vector.load %arg6[%c0_17, %c0_18] : memref<32x16xbf16, #tpu.memory_space<vmem>>, vector<32x16xbf16>
    %cst_19 = arith.constant dense<0.000000e+00> : vector<48x16xf32>
    %79 = tpu.matmul %77, %78, %cst_19 {dimension_numbers = #tpu.dot_dimension_numbers<[1], [0], [0], [1], [0, 0, 1, 1], [], []>} : vector<48x32xbf16>, vector<32x16xbf16>, vector<48x16xf32> -> vector<48x16xf32>
    %c0_20 = arith.constant 0 : index
    %c0_21 = arith.constant 0 : index
    %80 = vector.load %arg7[%c0_20, %c0_21] : memref<1x16xf32, #tpu.memory_space<vmem>>, vector<1x16xf32>
    %81 = vector.broadcast %80 : vector<1x16xf32> to vector<48x16xf32>
    %82 = arith.addf %79, %81 : vector<48x16xf32>
    %cst_22 = arith.constant 0.000000e+00 : f32
    %83 = vector.broadcast %cst_22 : f32 to vector<48x16xf32>
    %84 = arith.maximumf %82, %83 : vector<48x16xf32>
    %85 = vector.extract_strided_slice %84 {offsets = [0, 0], sizes = [24, 16], strides = [1, 1]} : vector<48x16xf32> to vector<24x16xf32>
    %cst_23 = arith.constant dense<0.000000e+00> : vector<16xf32>
    %86 = vector.multi_reduction <add>, %85, %cst_23 [0] : vector<24x16xf32> to vector<16xf32>
    %87 = vector.shape_cast %86 : vector<16xf32> to vector<1x16xf32>
    %88 = vector.extract_strided_slice %84 {offsets = [24, 0], sizes = [24, 16], strides = [1, 1]} : vector<48x16xf32> to vector<24x16xf32>
    %cst_24 = arith.constant dense<0.000000e+00> : vector<16xf32>
    %89 = vector.multi_reduction <add>, %88, %cst_24 [0] : vector<24x16xf32> to vector<16xf32>
    %90 = vector.shape_cast %89 : vector<16xf32> to vector<1x16xf32>
    %91 = tpu.concatenate %87, %90 in 0 : vector<1x16xf32>, vector<1x16xf32> -> vector<2x16xf32>
    %92 = vector.shape_cast %91 : vector<2x16xf32> to vector<1x2x16xf32>
    %c0_25 = arith.constant 0 : index
    %c0_26 = arith.constant 0 : index
    %c0_27 = arith.constant 0 : index
    %93 = vector.load %arg8[%c0_25, %c0_26, %c0_27] : memref<1x2x16xf32, #tpu.memory_space<vmem>>, vector<1x2x16xf32>
    tpu.vector_store %arg8[%c0_25, %c0_26, %c0_27], %92 {strides = array<i32>} : memref<1x2x16xf32, #tpu.memory_space<vmem>>, vector<1x2x16xf32>,
    return
  }
  func.func @transform_0(%arg0: i32) -> (i32, i32, i32) {
    %c0_i32 = arith.constant 0 : i32
    %c0_i32_0 = arith.constant 0 : i32
    %c0_i32_1 = arith.constant 0 : i32
    return %arg0, %c0_i32, %c0_i32_0 : i32, i32, i32
  }
  func.func @transform_1(%arg0: i32) -> (i32, i32, i32) {
    %c0_i32 = arith.constant 0 : i32
    %c0_i32_0 = arith.constant 0 : i32
    %c0_i32_1 = arith.constant 0 : i32
    return %arg0, %c0_i32, %c0_i32_0 : i32, i32, i32
  }
  func.func @transform_2(%arg0: i32) -> (i32, i32) {
    %c0_i32 = arith.constant 0 : i32
    %c0_i32_0 = arith.constant 0 : i32
    %c0_i32_1 = arith.constant 0 : i32
    return %c0_i32, %c0_i32_0 : i32, i32
  }
  func.func @transform_3(%arg0: i32) -> (i32, i32) {
    %c0_i32 = arith.constant 0 : i32
    %c0_i32_0 = arith.constant 0 : i32
    %c0_i32_1 = arith.constant 0 : i32
    return %c0_i32, %c0_i32_0 : i32, i32
  }
  func.func @transform_4(%arg0: i32) -> (i32, i32) {
    %c0_i32 = arith.constant 0 : i32
    %c0_i32_0 = arith.constant 0 : i32
    %c0_i32_1 = arith.constant 0 : i32
    return %c0_i32, %c0_i32_0 : i32, i32
  }
  func.func @transform_5(%arg0: i32) -> (i32, i32) {
    %c0_i32 = arith.constant 0 : i32
    %c0_i32_0 = arith.constant 0 : i32
    %c0_i32_1 = arith.constant 0 : i32
    return %c0_i32, %c0_i32_0 : i32, i32
  }
  func.func @transform_6(%arg0: i32) -> (i32, i32) {
    %c0_i32 = arith.constant 0 : i32
    %c0_i32_0 = arith.constant 0 : i32
    %c0_i32_1 = arith.constant 0 : i32
    return %c0_i32, %c0_i32_0 : i32, i32
  }
  func.func @transform_7(%arg0: i32) -> (i32, i32, i32) {
    %c0_i32 = arith.constant 0 : i32
    %c0_i32_0 = arith.constant 0 : i32
    %c0_i32_1 = arith.constant 0 : i32
    return %arg0, %c0_i32, %c0_i32_0 : i32, i32, i32
  }
}

</mosaic_0001>

<llo_original>
// kernel: tpu_custom_call.1
$region0: #{tpu_custom_call.1}
  #allocation0 [shape = 'u32[]', space=smem, size = 0x4, offset = 0x4, fixed_abs, tag = 'smem constant byte address 0x4 - core index']
  #allocation1 [shape = 'u32[144,128]{1,0:T(1,128)}', space=vmem, size = 0x12000, scoped, tag = 'internal scratch']
  %s0 = inlined_call_operand.vmem [shape: bf16[1,48,16], index: 0, kind: input, shape index: {}]
  %s1 = inlined_call_operand.vmem [shape: bf16[1,480,12], index: 1, kind: input, shape index: {}]
  %s2 = inlined_call_operand.vmem [shape: bf16[16,32], index: 2, kind: input, shape index: {}]
  %s3 = inlined_call_operand.vmem [shape: bf16[12,32], index: 3, kind: input, shape index: {}]
  %s4 = inlined_call_operand.vmem [shape: f32[1,32], index: 4, kind: input, shape index: {}]
  %s5 = inlined_call_operand.vmem [shape: bf16[32,16], index: 5, kind: input, shape index: {}]
  %s6 = inlined_call_operand.vmem [shape: f32[1,16], index: 6, kind: input, shape index: {}]
  %s7 = inlined_call_operand.hbm [shape: f32[1,2,16], index: 7, kind: output, shape index: {}]
  %s8 = sld [smem:[#allocation0]]
  $region38: #{tpu_custom_call.1} parent=0
    _
  %s10 = ssub.s32 1, %s8
  %s11 = scalar_select 0, %s10, %s8
  $region1: #{tpu_custom_call.1} parent=0
    #allocation2 [shape = 'u8[1024]{0}', space=vmem, size = 0x400, scoped, tag = 'output window, operand 0, single buffered']
    #allocation3 [shape = 's32[1]{0}', space=sflag, size = 0x4, scoped, tag = 'scoped memory for tpu_custom_call.1']
    %12 = vsyncpa [#allocation3], 0
    // Predicated region
    $region2: #{tpu_custom_call.1} parent=1 // pred_check
      _
    $region3: #{tpu_custom_call.1} parent=1 // pred_check_branch
      %14 = sbr.rel (0) target = $region5
    $region4: #{tpu_custom_call.1} parent=1 // pred_region
      _
    $region5: #{tpu_custom_call.1} parent=1 // pred_fallthru
      _
    // Predicated region
    $region6: #{tpu_custom_call.1} parent=1 // pred_check
      _
    $region7: #{tpu_custom_call.1} parent=1 // pred_check_branch
      %16 = sbr.rel (0) target = $region9
    $region8: #{tpu_custom_call.1} parent=1 // pred_region
      _
    $region9: #{tpu_custom_call.1} parent=1 // pred_fallthru
      _
    // Predicated region
    $region10: #{tpu_custom_call.1} parent=1 // pred_check
      _
    $region11: #{tpu_custom_call.1} parent=1 // pred_check_branch
      %18 = sbr.rel (0) target = $region13
    $region12: #{tpu_custom_call.1} parent=1 // pred_region
      _
    $region13: #{tpu_custom_call.1} parent=1 // pred_fallthru
      _
    // Predicated region
    $region14: #{tpu_custom_call.1} parent=1 // pred_check
      _
    $region15: #{tpu_custom_call.1} parent=1 // pred_check_branch
      %20 = sbr.rel (0) target = $region17
    $region16: #{tpu_custom_call.1} parent=1 // pred_region
      _
    $region17: #{tpu_custom_call.1} parent=1 // pred_fallthru
      _
    // Predicated region
    $region18: #{tpu_custom_call.1} parent=1 // pred_check
      _
    $region19: #{tpu_custom_call.1} parent=1 // pred_check_branch
      %22 = sbr.rel (0) target = $region21
    $region20: #{tpu_custom_call.1} parent=1 // pred_region
      _
    $region21: #{tpu_custom_call.1} parent=1 // pred_fallthru
      _
    // Predicated region
    $region22: #{tpu_custom_call.1} parent=1 // pred_check
      _
    $region23: #{tpu_custom_call.1} parent=1 // pred_check_branch
      %24 = sbr.rel (0) target = $region25
    $region24: #{tpu_custom_call.1} parent=1 // pred_region
      _
    $region25: #{tpu_custom_call.1} parent=1 // pred_fallthru
      _
    // Predicated region
    $region26: #{tpu_custom_call.1} parent=1 // pred_check
      _
    $region27: #{tpu_custom_call.1} parent=1 // pred_check_branch
      %26 = sbr.rel (0) target = $region29
    $region28: #{tpu_custom_call.1} parent=1 // pred_region
      _
    $region29: #{tpu_custom_call.1} parent=1 // pred_fallthru
      _
    %v28 = vld [vmem:[%s0] sm:$0xf]
    %v29 = vld [vmem:[%s0 + $0x4] sm:$0xf]
    %v30 = vld [vmem:[%s0 + $0x8] sm:$0xf]
    %v31 = vld [vmem:[%s0 + $0xc] sm:$0xf]
    %v32 = vld [vmem:[%s0 + $0x10] sm:$0xf]
    %v33 = vld [vmem:[%s0 + $0x14] sm:$0xf]
    %v34 = vld [vmem:[%s2] sm:$0xf]
    %v35 = vld [vmem:[%s2 + $0x4] sm:$0xf]
    %v42 = vunpack.c.l.b16 %v28
    %v43 = vunpack.c.l.b16 %v29
    %v44 = vunpack.c.l.b16 %v30
    %v45 = vunpack.c.l.b16 %v31
    %v46 = vunpack.c.l.b16 %v32
    %v47 = vunpack.c.l.b16 %v33
    %v48 = vpack.c.b16 %v43, %v42
    %v49 = vpack.c.b16 %v45, %v44
    %v50 = vpack.c.b16 %v47, %v46
    %v53 = vunpack.c.l.b16 %v34
    %v54 = vunpack.c.l.b16 %v35
    %v55 = vpack.c.b16 %v54, %v53
    %vm57 = vcmask 130048
    %v59 = vsel %vm57, %v48, 0
    %v62 = vsel %vm57, %v49, 0
    %v65 = vsel %vm57, %v50, 0
    %67 = vmatprep.subr.bf16.mxu0 0
    %68 = vmatpush1.bf16.msra.mxu0 %v55
    %69 = vmatprep.subr.bf16.mxu0 0
    %70 = vmatpush1.bf16.msra.mxu0 0
    %71 = vmatprep.subr.bf16.mxu0 0
    %72 = vmatpush1.bf16.msra.mxu0 0
    %73 = vmatprep.subr.bf16.mxu0 0
    %74 = vmatpush1.bf16.msra.mxu0 0
    %75 = vmatprep.subr.bf16.mxu0 0
    %76 = vmatpush1.bf16.msra.mxu0 0
    %77 = vmatprep.subr.bf16.mxu0 0
    %78 = vmatpush1.bf16.msra.mxu0 0
    %79 = vmatprep.subr.bf16.mxu0 0
    %80 = vmatpush1.bf16.msra.mxu0 0
    %81 = vmatprep.subr.bf16.mxu0 0
    %82 = vmatpush1.bf16.msra.mxu0 0
    %83 = vmatprep.subr.bf16.mxu0 0
    %84 = vmatpush1.bf16.msra.mxu0 0
    %85 = vmatprep.subr.bf16.mxu0 0
    %86 = vmatpush1.bf16.msra.mxu0 0
    %87 = vmatprep.subr.bf16.mxu0 0
    %88 = vmatpush1.bf16.msra.mxu0 0
    %89 = vmatprep.subr.bf16.mxu0 0
    %90 = vmatpush1.bf16.msra.mxu0 0
    %91 = vmatprep.subr.bf16.mxu0 0
    %92 = vmatpush1.bf16.msra.mxu0 0
    %93 = vmatprep.subr.bf16.mxu0 0
    %94 = vmatpush1.bf16.msra.mxu0 0
    %95 = vmatprep.subr.bf16.mxu0 0
    %96 = vmatpush1.bf16.msra.mxu0 0
    %97 = vmatprep.subr.bf16.mxu0 0
    %98 = vmatpush1.bf16.msra.mxu0 0
    %99 = vmatprep.mubr.bf16.mxu0 0
    %100 = vmatmul.mubr.bf16.gmra.mrb[0].mxu0 %v59
    %v101 = vpop.f32.mrb[0].mxu0
    %v102 = vadd.f32 0.0, %v101
    %v103 = vpop.f32.mrb[0].mxu0
    %v104 = vpop.f32.mrb[0].mxu0
    %v105 = vadd.f32 0.0, %v104
    %v106 = vpop.f32.mrb[0].mxu0
    %107 = vmatprep.mubr.bf16.mxu0 0
    %108 = vmatmul.mubr.bf16.gmra.mrb[0].mxu0 %v62
    %v109 = vpop.f32.mrb[0].mxu0
    %v110 = vadd.f32 0.0, %v109
    %v111 = vpop.f32.mrb[0].mxu0
    %v112 = vpop.f32.mrb[0].mxu0
    %v113 = vadd.f32 0.0, %v112
    %v114 = vpop.f32.mrb[0].mxu0
    %115 = vmatprep.mubr.bf16.mxu0 0
    %116 = vmatmul.mubr.bf16.gmra.mrb[0].mxu0 %v65
    %v117 = vpop.f32.mrb[0].mxu0
    %v118 = vadd.f32 0.0, %v117
    %v119 = vpop.f32.mrb[0].mxu0
    %v120 = vpop.f32.mrb[0].mxu0
    %v121 = vadd.f32 0.0, %v120
    %v122 = vpop.f32.mrb[0].mxu0
    %123 = vdwg.mxu0
    %v124 = vld [vmem:[%s1] sm:$0xf]
    %v125 = vld [vmem:[%s1 + $0x4] sm:$0xf]
    %v126 = vld [vmem:[%s1 + $0x8] sm:$0xf]
    %v127 = vld [vmem:[%s1 + $0xc] sm:$0xf]
    %v128 = vld [vmem:[%s1 + $0x10] sm:$0xf]
    %v129 = vld [vmem:[%s1 + $0x14] sm:$0xf]
    %v130 = vld [vmem:[%s1 + $0x18] sm:$0xf]
    %v131 = vld [vmem:[%s1 + $0x1c] sm:$0xf]
    %v132 = vld [vmem:[%s1 + $0x20] sm:$0xf]
    %v133 = vld [vmem:[%s1 + $0x24] sm:$0xf]
    %v134 = vld [vmem:[%s1 + $0x28] sm:$0xf]
    %v135 = vld [vmem:[%s1 + $0x2c] sm:$0xf]
    %v136 = vld [vmem:[%s1 + $0x30] sm:$0xf]
    %v137 = vld [vmem:[%s1 + $0x34] sm:$0xf]
    %v138 = vld [vmem:[%s1 + $0x38] sm:$0xf]
    %v139 = vld [vmem:[%s1 + $0x3c] sm:$0xf]
    %v140 = vld [vmem:[%s1 + $0x40] sm:$0xf]
    %v141 = vld [vmem:[%s1 + $0x44] sm:$0xf]
    %v142 = vld [vmem:[%s1 + $0x48] sm:$0xf]
    %v143 = vld [vmem:[%s1 + $0x4c] sm:$0xf]
    %v144 = vld [vmem:[%s1 + $0x50] sm:$0xf]
    %v145 = vld [vmem:[%s1 + $0x54] sm:$0xf]
    %v146 = vld [vmem:[%s1 + $0x58] sm:$0xf]
    %v147 = vld [vmem:[%s1 + $0x5c] sm:$0xf]
    %v148 = vld [vmem:[%s1 + $0x60] sm:$0xf]
    %v149 = vld [vmem:[%s1 + $0x64] sm:$0xf]
    %v150 = vld [vmem:[%s1 + $0x68] sm:$0xf]
    %v151 = vld [vmem:[%s1 + $0x6c] sm:$0xf]
    %v152 = vld [vmem:[%s1 + $0x70] sm:$0xf]
    %v153 = vld [vmem:[%s1 + $0x74] sm:$0xf]
    %v154 = vld [vmem:[%s1 + $0x78] sm:$0xf]
    %v155 = vld [vmem:[%s1 + $0x7c] sm:$0xf]
    %v156 = vld [vmem:[%s1 + $0x80] sm:$0xf]
    %v157 = vld [vmem:[%s1 + $0x84] sm:$0xf]
    %v158 = vld [vmem:[%s1 + $0x88] sm:$0xf]
    %v159 = vld [vmem:[%s1 + $0x8c] sm:$0xf]
    %v160 = vld [vmem:[%s1 + $0x90] sm:$0xf]
    %v161 = vld [vmem:[%s1 + $0x94] sm:$0xf]
    %v162 = vld [vmem:[%s1 + $0x98] sm:$0xf]
    %v163 = vld [vmem:[%s1 + $0x9c] sm:$0xf]
    %v164 = vld [vmem:[%s1 + $0xa0] sm:$0xf]
    %v165 = vld [vmem:[%s1 + $0xa4] sm:$0xf]
    %v166 = vld [vmem:[%s1 + $0xa8] sm:$0xf]
    %v167 = vld [vmem:[%s1 + $0xac] sm:$0xf]
    %v168 = vld [vmem:[%s1 + $0xb0] sm:$0xf]
    %v169 = vld [vmem:[%s1 + $0xb4] sm:$0xf]
    %v170 = vld [vmem:[%s1 + $0xb8] sm:$0xf]
    %v171 = vld [vmem:[%s1 + $0xbc] sm:$0xf]
    %v172 = vld [vmem:[%s1 + $0xc0] sm:$0xf]
    %v173 = vld [vmem:[%s1 + $0xc4] sm:$0xf]
    %v174 = vld [vmem:[%s1 + $0xc8] sm:$0xf]
    %v175 = vld [vmem:[%s1 + $0xcc] sm:$0xf]
    %v176 = vld [vmem:[%s1 + $0xd0] sm:$0xf]
    %v177 = vld [vmem:[%s1 + $0xd4] sm:$0xf]
    %v178 = vld [vmem:[%s1 + $0xd8] sm:$0xf]
    %v179 = vld [vmem:[%s1 + $0xdc] sm:$0xf]
    %v180 = vld [vmem:[%s1 + $0xe0] sm:$0xf]
    %v181 = vld [vmem:[%s1 + $0xe4] sm:$0xf]
    %v182 = vld [vmem:[%s1 + $0xe8] sm:$0xf]
    %v183 = vld [vmem:[%s1 + $0xec] sm:$0xf]
    %v184 = vld [vmem:[%s3] sm:$0xf]
    %v185 = vld [vmem:[%s3 + $0x4] sm:$0x3]
    %v246 = vunpack.c.l.b16 %v124
    %v247 = vunpack.c.l.b16 %v125
    %v248 = vunpack.c.l.b16 %v126
    %v249 = vunpack.c.l.b16 %v127
    %v250 = vunpack.c.l.b16 %v128
    %v251 = vunpack.c.l.b16 %v129
    %v252 = vunpack.c.l.b16 %v130
    %v253 = vunpack.c.l.b16 %v131
    %v254 = vunpack.c.l.b16 %v132
    %v255 = vunpack.c.l.b16 %v133
    %v256 = vunpack.c.l.b16 %v134
    %v257 = vunpack.c.l.b16 %v135
    %v258 = vunpack.c.l.b16 %v136
    %v259 = vunpack.c.l.b16 %v137
    %v260 = vunpack.c.l.b16 %v138
    %v261 = vunpack.c.l.b16 %v139
    %v262 = vunpack.c.l.b16 %v140
    %v263 = vunpack.c.l.b16 %v141
    %v264 = vunpack.c.l.b16 %v142
    %v265 = vunpack.c.l.b16 %v143
    %v266 = vunpack.c.l.b16 %v144
    %v267 = vunpack.c.l.b16 %v145
    %v268 = vunpack.c.l.b16 %v146
    %v269 = vunpack.c.l.b16 %v147
    %v270 = vunpack.c.l.b16 %v148
    %v271 = vunpack.c.l.b16 %v149
    %v272 = vunpack.c.l.b16 %v150
    %v273 = vunpack.c.l.b16 %v151
    %v274 = vunpack.c.l.b16 %v152
    %v275 = vunpack.c.l.b16 %v153
    %v276 = vunpack.c.l.b16 %v154
    %v277 = vunpack.c.l.b16 %v155
    %v278 = vunpack.c.l.b16 %v156
    %v279 = vunpack.c.l.b16 %v157
    %v280 = vunpack.c.l.b16 %v158
    %v281 = vunpack.c.l.b16 %v159
    %v282 = vunpack.c.l.b16 %v160
    %v283 = vunpack.c.l.b16 %v161
    %v284 = vunpack.c.l.b16 %v162
    %v285 = vunpack.c.l.b16 %v163
    %v286 = vunpack.c.l.b16 %v164
    %v287 = vunpack.c.l.b16 %v165
    %v288 = vunpack.c.l.b16 %v166
    %v289 = vunpack.c.l.b16 %v167
    %v290 = vunpack.c.l.b16 %v168
    %v291 = vunpack.c.l.b16 %v169
    %v292 = vunpack.c.l.b16 %v170
    %v293 = vunpack.c.l.b16 %v171
    %v294 = vunpack.c.l.b16 %v172
    %v295 = vunpack.c.l.b16 %v173
    %v296 = vunpack.c.l.b16 %v174
    %v297 = vunpack.c.l.b16 %v175
    %v298 = vunpack.c.l.b16 %v176
    %v299 = vunpack.c.l.b16 %v177
    %v300 = vunpack.c.l.b16 %v178
    %v301 = vunpack.c.l.b16 %v179
    %v302 = vunpack.c.l.b16 %v180
    %v303 = vunpack.c.l.b16 %v181
    %v304 = vunpack.c.l.b16 %v182
    %v305 = vunpack.c.l.b16 %v183
    %v306 = vpack.c.b16 %v247, %v246
    %v307 = vpack.c.b16 %v249, %v248
    %v308 = vpack.c.b16 %v251, %v250
    %v309 = vpack.c.b16 %v253, %v252
    %v310 = vpack.c.b16 %v255, %v254
    %v311 = vpack.c.b16 %v257, %v256
    %v312 = vpack.c.b16 %v259, %v258
    %v313 = vpack.c.b16 %v261, %v260
    %v314 = vpack.c.b16 %v263, %v262
    %v315 = vpack.c.b16 %v265, %v264
    %v316 = vpack.c.b16 %v267, %v266
    %v317 = vpack.c.b16 %v269, %v268
    %v318 = vpack.c.b16 %v271, %v270
    %v319 = vpack.c.b16 %v273, %v272
    %v320 = vpack.c.b16 %v275, %v274
    %v321 = vpack.c.b16 %v277, %v276
    %v322 = vpack.c.b16 %v279, %v278
    %v323 = vpack.c.b16 %v281, %v280
    %v324 = vpack.c.b16 %v283, %v282
    %v325 = vpack.c.b16 %v285, %v284
    %v326 = vpack.c.b16 %v287, %v286
    %v327 = vpack.c.b16 %v289, %v288
    %v328 = vpack.c.b16 %v291, %v290
    %v329 = vpack.c.b16 %v293, %v292
    %v330 = vpack.c.b16 %v295, %v294
    %v331 = vpack.c.b16 %v297, %v296
    %v332 = vpack.c.b16 %v299, %v298
    %v333 = vpack.c.b16 %v301, %v300
    %v334 = vpack.c.b16 %v303, %v302
    %v335 = vpack.c.b16 %v305, %v304
    %v338 = vunpack.c.l.b16 %v184
    %v339 = vunpack.c.l.b16 %v185
    %v340 = vpack.c.b16 %v339, %v338
    %vm341 = vcmask 97280
    %v343 = vsel %vm341, %v306, 0
    %v346 = vsel %vm341, %v307, 0
    %v349 = vsel %vm341, %v308, 0
    %v352 = vsel %vm341, %v309, 0
    %v355 = vsel %vm341, %v310, 0
    %v358 = vsel %vm341, %v311, 0
    %v361 = vsel %vm341, %v312, 0
    %v364 = vsel %vm341, %v313, 0
    %v367 = vsel %vm341, %v314, 0
    %v370 = vsel %vm341, %v315, 0
    %v373 = vsel %vm341, %v316, 0
    %v376 = vsel %vm341, %v317, 0
    %v379 = vsel %vm341, %v318, 0
    %v382 = vsel %vm341, %v319, 0
    %v385 = vsel %vm341, %v320, 0
    %v388 = vsel %vm341, %v321, 0
    %v391 = vsel %vm341, %v322, 0
    %v394 = vsel %vm341, %v323, 0
    %v397 = vsel %vm341, %v324, 0
    %v400 = vsel %vm341, %v325, 0
    %v403 = vsel %vm341, %v326, 0
    %v406 = vsel %vm341, %v327, 0
    %v409 = vsel %vm341, %v328, 0
    %v412 = vsel %vm341, %v329, 0
    %v415 = vsel %vm341, %v330, 0
    %v418 = vsel %vm341, %v331, 0
    %v421 = vsel %vm341, %v332, 0
    %v424 = vsel %vm341, %v333, 0
    %v427 = vsel %vm341, %v334, 0
    %v430 = vsel %vm341, %v335, 0
    %vm432 = vcmask 1045504
    %v434 = vsel %vm432, %v340, 0
    %436 = vmatprep.subr.bf16.mxu0 0
    %437 = vmatpush1.bf16.msra.mxu0 %v434
    %438 = vmatprep.subr.bf16.mxu0 0
    %439 = vmatpush1.bf16.msra.mxu0 0
    %440 = vmatprep.subr.bf16.mxu0 0
    %441 = vmatpush1.bf16.msra.mxu0 0
    %442 = vmatprep.subr.bf16.mxu0 0
    %443 = vmatpush1.bf16.msra.mxu0 0
    %444 = vmatprep.subr.bf16.mxu0 0
    %445 = vmatpush1.bf16.msra.mxu0 0
    %446 = vmatprep.subr.bf16.mxu0 0
    %447 = vmatpush1.bf16.msra.mxu0 0
    %448 = vmatprep.subr.bf16.mxu0 0
    %449 = vmatpush1.bf16.msra.mxu0 0
    %450 = vmatprep.subr.bf16.mxu0 0
    %451 = vmatpush1.bf16.msra.mxu0 0
    %452 = vmatprep.subr.bf16.mxu0 0
    %453 = vmatpush1.bf16.msra.mxu0 0
    %454 = vmatprep.subr.bf16.mxu0 0
    %455 = vmatpush1.bf16.msra.mxu0 0
    %456 = vmatprep.subr.bf16.mxu0 0
    %457 = vmatpush1.bf16.msra.mxu0 0
    %458 = vmatprep.subr.bf16.mxu0 0
    %459 = vmatpush1.bf16.msra.mxu0 0
    %460 = vmatprep.subr.bf16.mxu0 0
    %461 = vmatpush1.bf16.msra.mxu0 0
    %462 = vmatprep.subr.bf16.mxu0 0
    %463 = vmatpush1.bf16.msra.mxu0 0
    %464 = vmatprep.subr.bf16.mxu0 0
    %465 = vmatpush1.bf16.msra.mxu0 0
    %466 = vmatprep.subr.bf16.mxu0 0
    %467 = vmatpush1.bf16.msra.mxu0 0
    %468 = vmatprep.mubr.bf16.mxu0 0
    %469 = vmatmul.mubr.bf16.gmra.mrb[0].mxu0 %v343
    %v470 = vpop.f32.mrb[0].mxu0
    %v471 = vadd.f32 0.0, %v470
    %v472 = vpop.f32.mrb[0].mxu0
    %v473 = vpop.f32.mrb[0].mxu0
    %v474 = vadd.f32 0.0, %v473
    %v475 = vpop.f32.mrb[0].mxu0
    %476 = vmatprep.mubr.bf16.mxu0 0
    %477 = vmatmul.mubr.bf16.gmra.mrb[0].mxu0 %v346
    %v478 = vpop.f32.mrb[0].mxu0
    %v479 = vadd.f32 0.0, %v478
    %v480 = vpop.f32.mrb[0].mxu0
    %v481 = vpop.f32.mrb[0].mxu0
    %v482 = vadd.f32 0.0, %v481
    %v483 = vpop.f32.mrb[0].mxu0
    %484 = vmatprep.mubr.bf16.mxu0 0
    %485 = vmatmul.mubr.bf16.gmra.mrb[0].mxu0 %v349
    %v486 = vpop.f32.mrb[0].mxu0
    %v487 = vadd.f32 0.0, %v486
    %v488 = vpop.f32.mrb[0].mxu0
    %v489 = vpop.f32.mrb[0].mxu0
    %v490 = vadd.f32 0.0, %v489
    %v491 = vpop.f32.mrb[0].mxu0
    %492 = vmatprep.mubr.bf16.mxu0 0
    %493 = vmatmul.mubr.bf16.gmra.mrb[0].mxu0 %v352
    %v494 = vpop.f32.mrb[0].mxu0
    %v495 = vadd.f32 0.0, %v494
    %v496 = vpop.f32.mrb[0].mxu0
    %v497 = vpop.f32.mrb[0].mxu0
    %v498 = vadd.f32 0.0, %v497
    %v499 = vpop.f32.mrb[0].mxu0
    %500 = vmatprep.mubr.bf16.mxu0 0
    %501 = vmatmul.mubr.bf16.gmra.mrb[0].mxu0 %v355
    %v502 = vpop.f32.mrb[0].mxu0
    %v503 = vadd.f32 0.0, %v502
    %v504 = vpop.f32.mrb[0].mxu0
    %v505 = vpop.f32.mrb[0].mxu0
    %v506 = vadd.f32 0.0, %v505
    %v507 = vpop.f32.mrb[0].mxu0
    %508 = vmatprep.mubr.bf16.mxu0 0
    %509 = vmatmul.mubr.bf16.gmra.mrb[0].mxu0 %v358
    %v510 = vpop.f32.mrb[0].mxu0
    %v511 = vadd.f32 0.0, %v510
    %v512 = vpop.f32.mrb[0].mxu0
    %v513 = vpop.f32.mrb[0].mxu0
    %v514 = vadd.f32 0.0, %v513
    %v515 = vpop.f32.mrb[0].mxu0
    %516 = vmatprep.mubr.bf16.mxu0 0
    %517 = vmatmul.mubr.bf16.gmra.mrb[0].mxu0 %v361
    %v518 = vpop.f32.mrb[0].mxu0
    %v519 = vadd.f32 0.0, %v518
    %v520 = vpop.f32.mrb[0].mxu0
    %v521 = vpop.f32.mrb[0].mxu0
    %v522 = vadd.f32 0.0, %v521
    %v523 = vpop.f32.mrb[0].mxu0
    %524 = vmatprep.mubr.bf16.mxu0 0
    %525 = vmatmul.mubr.bf16.gmra.mrb[0].mxu0 %v364
    %v526 = vpop.f32.mrb[0].mxu0
    %v527 = vadd.f32 0.0, %v526
    %v528 = vpop.f32.mrb[0].mxu0
    %v529 = vpop.f32.mrb[0].mxu0
    %v530 = vadd.f32 0.0, %v529
    %v531 = vpop.f32.mrb[0].mxu0
    %532 = vmatprep.mubr.bf16.mxu0 0
    %533 = vmatmul.mubr.bf16.gmra.mrb[0].mxu0 %v367
    %v534 = vpop.f32.mrb[0].mxu0
    %v535 = vadd.f32 0.0, %v534
    %v536 = vpop.f32.mrb[0].mxu0
    %v537 = vpop.f32.mrb[0].mxu0
    %v538 = vadd.f32 0.0, %v537
    %v539 = vpop.f32.mrb[0].mxu0
    %540 = vmatprep.mubr.bf16.mxu0 0
    %541 = vmatmul.mubr.bf16.gmra.mrb[0].mxu0 %v370
    %v542 = vpop.f32.mrb[0].mxu0
    %v543 = vadd.f32 0.0, %v542
    %v544 = vpop.f32.mrb[0].mxu0
    %v545 = vpop.f32.mrb[0].mxu0
    %v546 = vadd.f32 0.0, %v545
    %v547 = vpop.f32.mrb[0].mxu0
    %548 = vmatprep.mubr.bf16.mxu0 0
    %549 = vmatmul.mubr.bf16.gmra.mrb[0].mxu0 %v373
    %v550 = vpop.f32.mrb[0].mxu0
    %v551 = vadd.f32 0.0, %v550
    %v552 = vpop.f32.mrb[0].mxu0
    %v553 = vpop.f32.mrb[0].mxu0
    %v554 = vadd.f32 0.0, %v553
    %v555 = vpop.f32.mrb[0].mxu0
    %556 = vmatprep.mubr.bf16.mxu0 0
    %557 = vmatmul.mubr.bf16.gmra.mrb[0].mxu0 %v376
    %v558 = vpop.f32.mrb[0].mxu0
    %v559 = vadd.f32 0.0, %v558
    %v560 = vpop.f32.mrb[0].mxu0
    %v561 = vpop.f32.mrb[0].mxu0
    %v562 = vadd.f32 0.0, %v561
    %v563 = vpop.f32.mrb[0].mxu0
    %564 = vmatprep.mubr.bf16.mxu0 0
    %565 = vmatmul.mubr.bf16.gmra.mrb[0].mxu0 %v379
    %v566 = vpop.f32.mrb[0].mxu0
    %v567 = vadd.f32 0.0, %v566
    %v568 = vpop.f32.mrb[0].mxu0
    %v569 = vpop.f32.mrb[0].mxu0
    %v570 = vadd.f32 0.0, %v569
    %v571 = vpop.f32.mrb[0].mxu0
    %572 = vmatprep.mubr.bf16.mxu0 0
    %573 = vmatmul.mubr.bf16.gmra.mrb[0].mxu0 %v382
    %v574 = vpop.f32.mrb[0].mxu0
    %v575 = vadd.f32 0.0, %v574
    %v576 = vpop.f32.mrb[0].mxu0
    %v577 = vpop.f32.mrb[0].mxu0
    %v578 = vadd.f32 0.0, %v577
    %v579 = vpop.f32.mrb[0].mxu0
    %580 = vmatprep.mubr.bf16.mxu0 0
    %581 = vmatmul.mubr.bf16.gmra.mrb[0].mxu0 %v385
    %v582 = vpop.f32.mrb[0].mxu0
    %v583 = vadd.f32 0.0, %v582
    %v584 = vpop.f32.mrb[0].mxu0
    %v585 = vpop.f32.mrb[0].mxu0
    %v586 = vadd.f32 0.0, %v585
    %v587 = vpop.f32.mrb[0].mxu0
    %588 = vmatprep.mubr.bf16.mxu0 0
    %589 = vmatmul.mubr.bf16.gmra.mrb[0].mxu0 %v388
    %v590 = vpop.f32.mrb[0].mxu0
    %v591 = vadd.f32 0.0, %v590
    %v592 = vpop.f32.mrb[0].mxu0
    %v593 = vpop.f32.mrb[0].mxu0
    %v594 = vadd.f32 0.0, %v593
    %v595 = vpop.f32.mrb[0].mxu0
    %596 = vmatprep.mubr.bf16.mxu0 0
    %597 = vmatmul.mubr.bf16.gmra.mrb[0].mxu0 %v391
    %v598 = vpop.f32.mrb[0].mxu0
    %v599 = vadd.f32 0.0, %v598
    %v600 = vpop.f32.mrb[0].mxu0
    %v601 = vpop.f32.mrb[0].mxu0
    %v602 = vadd.f32 0.0, %v601
    %v603 = vpop.f32.mrb[0].mxu0
    %604 = vmatprep.mubr.bf16.mxu0 0
    %605 = vmatmul.mubr.bf16.gmra.mrb[0].mxu0 %v394
    %v606 = vpop.f32.mrb[0].mxu0
    %v607 = vadd.f32 0.0, %v606
    %v608 = vpop.f32.mrb[0].mxu0
    %v609 = vpop.f32.mrb[0].mxu0
    %v610 = vadd.f32 0.0, %v609
    %v611 = vpop.f32.mrb[0].mxu0
    %612 = vmatprep.mubr.bf16.mxu0 0
    %613 = vmatmul.mubr.bf16.gmra.mrb[0].mxu0 %v397
    %v614 = vpop.f32.mrb[0].mxu0
    %v615 = vadd.f32 0.0, %v614
    %v616 = vpop.f32.mrb[0].mxu0
    %v617 = vpop.f32.mrb[0].mxu0
    %v618 = vadd.f32 0.0, %v617
    %v619 = vpop.f32.mrb[0].mxu0
    %620 = vmatprep.mubr.bf16.mxu0 0
    %621 = vmatmul.mubr.bf16.gmra.mrb[0].mxu0 %v400
    %v622 = vpop.f32.mrb[0].mxu0
    %v623 = vadd.f32 0.0, %v622
    %v624 = vpop.f32.mrb[0].mxu0
    %v625 = vpop.f32.mrb[0].mxu0
    %v626 = vadd.f32 0.0, %v625
    %v627 = vpop.f32.mrb[0].mxu0
    %628 = vmatprep.mubr.bf16.mxu0 0
    %629 = vmatmul.mubr.bf16.gmra.mrb[0].mxu0 %v403
    %v630 = vpop.f32.mrb[0].mxu0
    %v631 = vadd.f32 0.0, %v630
    %v632 = vpop.f32.mrb[0].mxu0
    %v633 = vpop.f32.mrb[0].mxu0
    %v634 = vadd.f32 0.0, %v633
    %v635 = vpop.f32.mrb[0].mxu0
    %636 = vmatprep.mubr.bf16.mxu0 0
    %637 = vmatmul.mubr.bf16.gmra.mrb[0].mxu0 %v406
    %v638 = vpop.f32.mrb[0].mxu0
    %v639 = vadd.f32 0.0, %v638
    %v640 = vpop.f32.mrb[0].mxu0
    %v641 = vpop.f32.mrb[0].mxu0
    %v642 = vadd.f32 0.0, %v641
    %v643 = vpop.f32.mrb[0].mxu0
    %644 = vmatprep.mubr.bf16.mxu0 0
    %645 = vmatmul.mubr.bf16.gmra.mrb[0].mxu0 %v409
    %v646 = vpop.f32.mrb[0].mxu0
    %v647 = vadd.f32 0.0, %v646
    %v648 = vpop.f32.mrb[0].mxu0
    %v649 = vpop.f32.mrb[0].mxu0
    %v650 = vadd.f32 0.0, %v649
    %v651 = vpop.f32.mrb[0].mxu0
    %652 = vmatprep.mubr.bf16.mxu0 0
    %653 = vmatmul.mubr.bf16.gmra.mrb[0].mxu0 %v412
    %v654 = vpop.f32.mrb[0].mxu0
    %v655 = vadd.f32 0.0, %v654
    %v656 = vpop.f32.mrb[0].mxu0
    %v657 = vpop.f32.mrb[0].mxu0
    %v658 = vadd.f32 0.0, %v657
    %v659 = vpop.f32.mrb[0].mxu0
    %660 = vmatprep.mubr.bf16.mxu0 0
    %661 = vmatmul.mubr.bf16.gmra.mrb[0].mxu0 %v415
    %v662 = vpop.f32.mrb[0].mxu0
    %v663 = vadd.f32 0.0, %v662
    %v664 = vpop.f32.mrb[0].mxu0
    %v665 = vpop.f32.mrb[0].mxu0
    %v666 = vadd.f32 0.0, %v665
    %v667 = vpop.f32.mrb[0].mxu0
    %668 = vmatprep.mubr.bf16.mxu0 0
    %669 = vmatmul.mubr.bf16.gmra.mrb[0].mxu0 %v418
    %v670 = vpop.f32.mrb[0].mxu0
    %v671 = vadd.f32 0.0, %v670
    %v672 = vpop.f32.mrb[0].mxu0
    %v673 = vpop.f32.mrb[0].mxu0
    %v674 = vadd.f32 0.0, %v673
    %v675 = vpop.f32.mrb[0].mxu0
    %676 = vmatprep.mubr.bf16.mxu0 0
    %677 = vmatmul.mubr.bf16.gmra.mrb[0].mxu0 %v421
    %v678 = vpop.f32.mrb[0].mxu0
    %v679 = vadd.f32 0.0, %v678
    %v680 = vpop.f32.mrb[0].mxu0
    %v681 = vpop.f32.mrb[0].mxu0
    %v682 = vadd.f32 0.0, %v681
    %v683 = vpop.f32.mrb[0].mxu0
    %684 = vmatprep.mubr.bf16.mxu0 0
    %685 = vmatmul.mubr.bf16.gmra.mrb[0].mxu0 %v424
    %v686 = vpop.f32.mrb[0].mxu0
    %v687 = vadd.f32 0.0, %v686
    %v688 = vpop.f32.mrb[0].mxu0
    %v689 = vpop.f32.mrb[0].mxu0
    %v690 = vadd.f32 0.0, %v689
    %v691 = vpop.f32.mrb[0].mxu0
    %692 = vmatprep.mubr.bf16.mxu0 0
    %693 = vmatmul.mubr.bf16.gmra.mrb[0].mxu0 %v427
    %v694 = vpop.f32.mrb[0].mxu0
    %v695 = vadd.f32 0.0, %v694
    %v696 = vpop.f32.mrb[0].mxu0
    %v697 = vpop.f32.mrb[0].mxu0
    %v698 = vadd.f32 0.0, %v697
    %v699 = vpop.f32.mrb[0].mxu0
    %700 = vmatprep.mubr.bf16.mxu0 0
    %701 = vmatmul.mubr.bf16.gmra.mrb[0].mxu0 %v430
    %v702 = vpop.f32.mrb[0].mxu0
    %v703 = vadd.f32 0.0, %v702
    %v704 = vpop.f32.mrb[0].mxu0
    %v705 = vpop.f32.mrb[0].mxu0
    %v706 = vadd.f32 0.0, %v705
    %v707 = vpop.f32.mrb[0].mxu0
    %708 = vdwg.mxu0
    %v709 = vld [vmem:[%s4] sm:$0x1]
    %v711 = vlaneseq
    %v712 = vshrl.u32 %v711, 7
    %v713 = vsub.s32 0, %v712
    %v714 = vrot.slane %v709, %v713
    %v716 = vmul.f32 %v102, %v714
    %v717 = vmul.f32 %v105, %v714
    %v718 = vmul.f32 %v110, %v714
    %v719 = vmul.f32 %v113, %v714
    %v720 = vmul.f32 %v118, %v714
    %v721 = vmul.f32 %v121, %v714
    %v722 = vmul.f32 %v471, %v591
    %v723 = vmul.f32 %v474, %v594
    %v724 = vmul.f32 %v479, %v599
    %v725 = vmul.f32 %v482, %v602
    %v726 = vmul.f32 %v487, %v607
    %v727 = vmul.f32 %v490, %v610
    %v728 = vmul.f32 %v722, %v716
    %v729 = vmul.f32 %v723, %v717
    %v730 = vmul.f32 %v724, %v718
    %v731 = vmul.f32 %v725, %v719
    %v732 = vmul.f32 %v726, %v720
    %v733 = vmul.f32 %v727, %v721
    %vm734 = vcmask 261120
    %v735 = vsel %vm734, %v728, 0.0
    %736 = vadd.xlane.f32.xlu0 %v735
    %v737 = vpop.xlane.xlu0 %736
    %v738 = vsel %vm734, %v729, 0.0
    %739 = vadd.xlane.f32.xlu0 %v738
    %v740 = vpop.xlane.xlu0 %739
    %v741 = vsel %vm734, %v730, 0.0
    %742 = vadd.xlane.f32.xlu0 %v741
    %v743 = vpop.xlane.xlu0 %742
    %v744 = vsel %vm734, %v731, 0.0
    %745 = vadd.xlane.f32.xlu0 %v744
    %v746 = vpop.xlane.xlu0 %745
    %v747 = vsel %vm734, %v732, 0.0
    %748 = vadd.xlane.f32.xlu0 %v747
    %v749 = vpop.xlane.xlu0 %748
    %v750 = vsel %vm734, %v733, 0.0
    %751 = vadd.xlane.f32.xlu0 %v750
    %v752 = vpop.xlane.xlu0 %751
    %v753 = vmul.f32 %v495, %v615
    %v754 = vmul.f32 %v498, %v618
    %v755 = vmul.f32 %v503, %v623
    %v756 = vmul.f32 %v506, %v626
    %v757 = vmul.f32 %v511, %v631
    %v758 = vmul.f32 %v514, %v634
    %v759 = vmul.f32 %v753, %v716
    %v760 = vmul.f32 %v754, %v717
    %v761 = vmul.f32 %v755, %v718
    %v762 = vmul.f32 %v756, %v719
    %v763 = vmul.f32 %v757, %v720
    %v764 = vmul.f32 %v758, %v721
    %v765 = vsel %vm734, %v759, 0.0
    %766 = vadd.xlane.f32.xlu0 %v765
    %v767 = vpop.xlane.xlu0 %766
    %v768 = vsel %vm734, %v760, 0.0
    %769 = vadd.xlane.f32.xlu0 %v768
    %v770 = vpop.xlane.xlu0 %769
    %v771 = vsel %vm734, %v761, 0.0
    %772 = vadd.xlane.f32.xlu0 %v771
    %v773 = vpop.xlane.xlu0 %772
    %v774 = vsel %vm734, %v762, 0.0
    %775 = vadd.xlane.f32.xlu0 %v774
    %v776 = vpop.xlane.xlu0 %775
    %v777 = vsel %vm734, %v763, 0.0
    %778 = vadd.xlane.f32.xlu0 %v777
    %v779 = vpop.xlane.xlu0 %778
    %v780 = vsel %vm734, %v764, 0.0
    %781 = vadd.xlane.f32.xlu0 %v780
    %v782 = vpop.xlane.xlu0 %781
    %v783 = vmul.f32 %v519, %v639
    %v784 = vmul.f32 %v522, %v642
    %v785 = vmul.f32 %v527, %v647
    %v786 = vmul.f32 %v530, %v650
    %v787 = vmul.f32 %v535, %v655
    %v788 = vmul.f32 %v538, %v658
    %v789 = vmul.f32 %v783, %v716
    %v790 = vmul.f32 %v784, %v717
    %v791 = vmul.f32 %v785, %v718
    %v792 = vmul.f32 %v786, %v719
    %v793 = vmul.f32 %v787, %v720
    %v794 = vmul.f32 %v788, %v721
    %v795 = vsel %vm734, %v789, 0.0
    %796 = vadd.xlane.f32.xlu0 %v795
    %v797 = vpop.xlane.xlu0 %796
    %v798 = vsel %vm734, %v790, 0.0
    %799 = vadd.xlane.f32.xlu0 %v798
    %v800 = vpop.xlane.xlu0 %799
    %v801 = vsel %vm734, %v791, 0.0
    %802 = vadd.xlane.f32.xlu0 %v801
    %v803 = vpop.xlane.xlu0 %802
    %v804 = vsel %vm734, %v792, 0.0
    %805 = vadd.xlane.f32.xlu0 %v804
    %v806 = vpop.xlane.xlu0 %805
    %v807 = vsel %vm734, %v793, 0.0
    %808 = vadd.xlane.f32.xlu0 %v807
    %v809 = vpop.xlane.xlu0 %808
    %v810 = vsel %vm734, %v794, 0.0
    %811 = vadd.xlane.f32.xlu0 %v810
    %v812 = vpop.xlane.xlu0 %811
    %v813 = vmul.f32 %v543, %v663
    %v814 = vmul.f32 %v546, %v666
    %v815 = vmul.f32 %v551, %v671
    %v816 = vmul.f32 %v554, %v674
    %v817 = vmul.f32 %v559, %v679
    %v818 = vmul.f32 %v562, %v682
    %v819 = vmul.f32 %v813, %v716
    %v820 = vmul.f32 %v814, %v717
    %v821 = vmul.f32 %v815, %v718
    %v822 = vmul.f32 %v816, %v719
    %v823 = vmul.f32 %v817, %v720
    %v824 = vmul.f32 %v818, %v721
    %v825 = vsel %vm734, %v819, 0.0
    %826 = vadd.xlane.f32.xlu0 %v825
    %v827 = vpop.xlane.xlu0 %826
    %v828 = vsel %vm734, %v820, 0.0
    %829 = vadd.xlane.f32.xlu0 %v828
    %v830 = vpop.xlane.xlu0 %829
    %v831 = vsel %vm734, %v821, 0.0
    %832 = vadd.xlane.f32.xlu0 %v831
    %v833 = vpop.xlane.xlu0 %832
    %v834 = vsel %vm734, %v822, 0.0
    %835 = vadd.xlane.f32.xlu0 %v834
    %v836 = vpop.xlane.xlu0 %835
    %v837 = vsel %vm734, %v823, 0.0
    %838 = vadd.xlane.f32.xlu0 %v837
    %v839 = vpop.xlane.xlu0 %838
    %v840 = vsel %vm734, %v824, 0.0
    %841 = vadd.xlane.f32.xlu0 %v840
    %v842 = vpop.xlane.xlu0 %841
    %v843 = vmul.f32 %v567, %v687
    %v844 = vmul.f32 %v570, %v690
    %v845 = vmul.f32 %v575, %v695
    %v846 = vmul.f32 %v578, %v698
    %v847 = vmul.f32 %v583, %v703
    %v848 = vmul.f32 %v586, %v706
    %v849 = vmul.f32 %v843, %v716
    %v850 = vmul.f32 %v844, %v717
    %v851 = vmul.f32 %v845, %v718
    %v852 = vmul.f32 %v846, %v719
    %v853 = vmul.f32 %v847, %v720
    %v854 = vmul.f32 %v848, %v721
    %v855 = vsel %vm734, %v849, 0.0
    %856 = vadd.xlane.f32.xlu0 %v855
    %v857 = vpop.xlane.xlu0 %856
    %v858 = vsel %vm734, %v850, 0.0
    %859 = vadd.xlane.f32.xlu0 %v858
    %v860 = vpop.xlane.xlu0 %859
    %v861 = vsel %vm734, %v851, 0.0
    %862 = vadd.xlane.f32.xlu0 %v861
    %v863 = vpop.xlane.xlu0 %862
    %v864 = vsel %vm734, %v852, 0.0
    %865 = vadd.xlane.f32.xlu0 %v864
    %v866 = vpop.xlane.xlu0 %865
    %v867 = vsel %vm734, %v853, 0.0
    %868 = vadd.xlane.f32.xlu0 %v867
    %v869 = vpop.xlane.xlu0 %868
    %v870 = vsel %vm734, %v854, 0.0
    %871 = vadd.xlane.f32.xlu0 %v870
    %v872 = vpop.xlane.xlu0 %871
    %v873 = vmax.f32 %v737, %v767
    %v874 = vmax.f32 %v740, %v770
    %v875 = vmax.f32 %v743, %v773
    %v876 = vmax.f32 %v746, %v776
    %v877 = vmax.f32 %v749, %v779
    %v878 = vmax.f32 %v752, %v782
    %v879 = vmax.f32 %v873, %v797
    %v880 = vmax.f32 %v874, %v800
    %v881 = vmax.f32 %v875, %v803
    %v882 = vmax.f32 %v876, %v806
    %v883 = vmax.f32 %v877, %v809
    %v884 = vmax.f32 %v878, %v812
    %v885 = vmax.f32 %v879, %v827
    %v886 = vmax.f32 %v880, %v830
    %v887 = vmax.f32 %v881, %v833
    %v888 = vmax.f32 %v882, %v836
    %v889 = vmax.f32 %v883, %v839
    %v890 = vmax.f32 %v884, %v842
    %v891 = vmax.f32 %v885, %v857
    %v892 = vmax.f32 %v886, %v860
    %v893 = vmax.f32 %v887, %v863
    %v894 = vmax.f32 %v888, %v866
    %v895 = vmax.f32 %v889, %v869
    %v896 = vmax.f32 %v890, %v872
    %v897 = vsub.f32 %v737, %v891
    %v898 = vsub.f32 %v740, %v892
    %v899 = vsub.f32 %v743, %v893
    %v900 = vsub.f32 %v746, %v894
    %v901 = vsub.f32 %v749, %v895
    %v902 = vsub.f32 %v752, %v896
    %v903 = vmul.f32 %v897, 1.442695
    %v904 = vpow.pop %v903
    %v905 = vmul.f32 %v898, 1.442695
    %v906 = vpow.pop %v905
    %v907 = vmul.f32 %v899, 1.442695
    %v908 = vpow.pop %v907
    %v909 = vmul.f32 %v900, 1.442695
    %v910 = vpow.pop %v909
    %v911 = vmul.f32 %v901, 1.442695
    %v912 = vpow.pop %v911
    %v913 = vmul.f32 %v902, 1.442695
    %v914 = vpow.pop %v913
    %v915 = vsub.f32 %v767, %v891
    %v916 = vsub.f32 %v770, %v892
    %v917 = vsub.f32 %v773, %v893
    %v918 = vsub.f32 %v776, %v894
    %v919 = vsub.f32 %v779, %v895
    %v920 = vsub.f32 %v782, %v896
    %v921 = vmul.f32 %v915, 1.442695
    %v922 = vpow.pop %v921
    %v923 = vmul.f32 %v916, 1.442695
    %v924 = vpow.pop %v923
    %v925 = vmul.f32 %v917, 1.442695
    %v926 = vpow.pop %v925
    %v927 = vmul.f32 %v918, 1.442695
    %v928 = vpow.pop %v927
    %v929 = vmul.f32 %v919, 1.442695
    %v930 = vpow.pop %v929
    %v931 = vmul.f32 %v920, 1.442695
    %v932 = vpow.pop %v931
    %v933 = vsub.f32 %v797, %v891
    %v934 = vsub.f32 %v800, %v892
    %v935 = vsub.f32 %v803, %v893
    %v936 = vsub.f32 %v806, %v894
    %v937 = vsub.f32 %v809, %v895
    %v938 = vsub.f32 %v812, %v896
    %v939 = vmul.f32 %v933, 1.442695
    %v940 = vpow.pop %v939
    %v941 = vmul.f32 %v934, 1.442695
    %v942 = vpow.pop %v941
    %v943 = vmul.f32 %v935, 1.442695
    %v944 = vpow.pop %v943
    %v945 = vmul.f32 %v936, 1.442695
    %v946 = vpow.pop %v945
    %v947 = vmul.f32 %v937, 1.442695
    %v948 = vpow.pop %v947
    %v949 = vmul.f32 %v938, 1.442695
    %v950 = vpow.pop %v949
    %v951 = vsub.f32 %v827, %v891
    %v952 = vsub.f32 %v830, %v892
    %v953 = vsub.f32 %v833, %v893
    %v954 = vsub.f32 %v836, %v894
    %v955 = vsub.f32 %v839, %v895
    %v956 = vsub.f32 %v842, %v896
    %v957 = vmul.f32 %v951, 1.442695
    %v958 = vpow.pop %v957
    %v959 = vmul.f32 %v952, 1.442695
    %v960 = vpow.pop %v959
    %v961 = vmul.f32 %v953, 1.442695
    %v962 = vpow.pop %v961
    %v963 = vmul.f32 %v954, 1.442695
    %v964 = vpow.pop %v963
    %v965 = vmul.f32 %v955, 1.442695
    %v966 = vpow.pop %v965
    %v967 = vmul.f32 %v956, 1.442695
    %v968 = vpow.pop %v967
    %v969 = vsub.f32 %v857, %v891
    %v970 = vsub.f32 %v860, %v892
    %v971 = vsub.f32 %v863, %v893
    %v972 = vsub.f32 %v866, %v894
    %v973 = vsub.f32 %v869, %v895
    %v974 = vsub.f32 %v872, %v896
    %v975 = vmul.f32 %v969, 1.442695
    %v976 = vpow.pop %v975
    %v977 = vmul.f32 %v970, 1.442695
    %v978 = vpow.pop %v977
    %v979 = vmul.f32 %v971, 1.442695
    %v980 = vpow.pop %v979
    %v981 = vmul.f32 %v972, 1.442695
    %v982 = vpow.pop %v981
    %v983 = vmul.f32 %v973, 1.442695
    %v984 = vpow.pop %v983
    %v985 = vmul.f32 %v974, 1.442695
    %v986 = vpow.pop %v985
    %v987 = vadd.f32 %v904, %v922
    %v988 = vadd.f32 %v906, %v924
    %v989 = vadd.f32 %v908, %v926
    %v990 = vadd.f32 %v910, %v928
    %v991 = vadd.f32 %v912, %v930
    %v992 = vadd.f32 %v914, %v932
    %v993 = vadd.f32 %v987, %v940
    %v994 = vadd.f32 %v988, %v942
    %v995 = vadd.f32 %v989, %v944
    %v996 = vadd.f32 %v990, %v946
    %v997 = vadd.f32 %v991, %v948
    %v998 = vadd.f32 %v992, %v950
    %v999 = vadd.f32 %v993, %v958
    %v1000 = vadd.f32 %v994, %v960
    %v1001 = vadd.f32 %v995, %v962
    %v1002 = vadd.f32 %v996, %v964
    %v1003 = vadd.f32 %v997, %v966
    %v1004 = vadd.f32 %v998, %v968
    %v1005 = vadd.f32 %v999, %v976
    %v1006 = vadd.f32 %v1000, %v978
    %v1007 = vadd.f32 %v1001, %v980
    %v1008 = vadd.f32 %v1002, %v982
    %v1009 = vadd.f32 %v1003, %v984
    %v1010 = vadd.f32 %v1004, %v986
    %v1011 = vrcp.pop %v1005
    %v1012 = vrcp.pop %v1006
    %v1013 = vrcp.pop %v1007
    %v1014 = vrcp.pop %v1008
    %v1015 = vrcp.pop %v1009
    %v1016 = vrcp.pop %v1010
    %v1017 = vmul.f32 %v904, %v722
    %v1018 = vmul.f32 %v906, %v723
    %v1019 = vmul.f32 %v908, %v724
    %v1020 = vmul.f32 %v910, %v725
    %v1021 = vmul.f32 %v912, %v726
    %v1022 = vmul.f32 %v914, %v727
    %v1023 = vmul.f32 %v922, %v753
    %v1024 = vmul.f32 %v924, %v754
    %v1025 = vmul.f32 %v926, %v755
    %v1026 = vmul.f32 %v928, %v756
    %v1027 = vmul.f32 %v930, %v757
    %v1028 = vmul.f32 %v932, %v758
    %v1029 = vadd.f32 %v1017, %v1023
    %v1030 = vadd.f32 %v1018, %v1024
    %v1031 = vadd.f32 %v1019, %v1025
    %v1032 = vadd.f32 %v1020, %v1026
    %v1033 = vadd.f32 %v1021, %v1027
    %v1034 = vadd.f32 %v1022, %v1028
    %v1035 = vmul.f32 %v940, %v783
    %v1036 = vmul.f32 %v942, %v784
    %v1037 = vmul.f32 %v944, %v785
    %v1038 = vmul.f32 %v946, %v786
    %v1039 = vmul.f32 %v948, %v787
    %v1040 = vmul.f32 %v950, %v788
    %v1041 = vadd.f32 %v1029, %v1035
    %v1042 = vadd.f32 %v1030, %v1036
    %v1043 = vadd.f32 %v1031, %v1037
    %v1044 = vadd.f32 %v1032, %v1038
    %v1045 = vadd.f32 %v1033, %v1039
    %v1046 = vadd.f32 %v1034, %v1040
    %v1047 = vmul.f32 %v958, %v813
    %v1048 = vmul.f32 %v960, %v814
    %v1049 = vmul.f32 %v962, %v815
    %v1050 = vmul.f32 %v964, %v816
    %v1051 = vmul.f32 %v966, %v817
    %v1052 = vmul.f32 %v968, %v818
    %v1053 = vadd.f32 %v1041, %v1047
    %v1054 = vadd.f32 %v1042, %v1048
    %v1055 = vadd.f32 %v1043, %v1049
    %v1056 = vadd.f32 %v1044, %v1050
    %v1057 = vadd.f32 %v1045, %v1051
    %v1058 = vadd.f32 %v1046, %v1052
    %v1059 = vmul.f32 %v976, %v843
    %v1060 = vmul.f32 %v978, %v844
    %v1061 = vmul.f32 %v980, %v845
    %v1062 = vmul.f32 %v982, %v846
    %v1063 = vmul.f32 %v984, %v847
    %v1064 = vmul.f32 %v986, %v848
    %v1065 = vadd.f32 %v1053, %v1059
    %v1066 = vadd.f32 %v1054, %v1060
    %v1067 = vadd.f32 %v1055, %v1061
    %v1068 = vadd.f32 %v1056, %v1062
    %v1069 = vadd.f32 %v1057, %v1063
    %v1070 = vadd.f32 %v1058, %v1064
    %v1071 = vmul.f32 %v102, %v1065
    %v1072 = vmul.f32 %v105, %v1066
    %v1073 = vmul.f32 %v110, %v1067
    %v1074 = vmul.f32 %v113, %v1068
    %v1075 = vmul.f32 %v118, %v1069
    %v1076 = vmul.f32 %v121, %v1070
    %v1077 = vmul.f32 %v1071, %v1011
    %v1078 = vmul.f32 %v1072, %v1012
    %v1079 = vmul.f32 %v1073, %v1013
    %v1080 = vmul.f32 %v1074, %v1014
    %v1081 = vmul.f32 %v1075, %v1015
    %v1082 = vmul.f32 %v1076, %v1016
    %v1083 = vpack.c.bf16 %v1078, %v1077
    %v1084 = vpack.c.bf16 %v1080, %v1079
    %v1085 = vpack.c.bf16 %v1082, %v1081
    %v1086 = vld [vmem:[%s5] sm:$0xf]
    %v1087 = vld [vmem:[%s5 + $0x4] sm:$0xf]
    %v1088 = vld [vmem:[%s5 + $0x8] sm:$0xf]
    %v1089 = vld [vmem:[%s5 + $0xc] sm:$0xf]
    %v1090 = vld [vmem:[%s6] sm:$0x1]
    %v1092 = vlaneseq
    %v1093 = vshrl.u32 %v1092, 7
    %v1094 = vsub.s32 0, %v1093
    %v1095 = vrot.slane %v1090, %v1094
    %v1101 = vunpack.c.l.b16 %v1086
    %v1102 = vunpack.c.l.b16 %v1087
    %v1103 = vunpack.c.l.b16 %v1088
    %v1104 = vunpack.c.l.b16 %v1089
    %v1105 = vpack.c.b16 %v1102, %v1101
    %v1106 = vpack.c.b16 %v1104, %v1103
    %v1110 = vsel %vm734, %v1083, 0
    %v1113 = vsel %vm734, %v1084, 0
    %v1116 = vsel %vm734, %v1085, 0
    %1118 = vmatprep.subr.bf16.mxu0 0
    %1119 = vmatpush1.bf16.msra.mxu0 %v1105
    %1120 = vmatprep.subr.bf16.mxu0 0
    %1121 = vmatpush1.bf16.msra.mxu0 %v1106
    %1122 = vmatprep.subr.bf16.mxu0 0
    %1123 = vmatpush1.bf16.msra.mxu0 0
    %1124 = vmatprep.subr.bf16.mxu0 0
    %1125 = vmatpush1.bf16.msra.mxu0 0
    %1126 = vmatprep.subr.bf16.mxu0 0
    %1127 = vmatpush1.bf16.msra.mxu0 0
    %1128 = vmatprep.subr.bf16.mxu0 0
    %1129 = vmatpush1.bf16.msra.mxu0 0
    %1130 = vmatprep.subr.bf16.mxu0 0
    %1131 = vmatpush1.bf16.msra.mxu0 0
    %1132 = vmatprep.subr.bf16.mxu0 0
    %1133 = vmatpush1.bf16.msra.mxu0 0
    %1134 = vmatprep.subr.bf16.mxu0 0
    %1135 = vmatpush1.bf16.msra.mxu0 0
    %1136 = vmatprep.subr.bf16.mxu0 0
    %1137 = vmatpush1.bf16.msra.mxu0 0
    %1138 = vmatprep.subr.bf16.mxu0 0
    %1139 = vmatpush1.bf16.msra.mxu0 0
    %1140 = vmatprep.subr.bf16.mxu0 0
    %1141 = vmatpush1.bf16.msra.mxu0 0
    %1142 = vmatprep.subr.bf16.mxu0 0
    %1143 = vmatpush1.bf16.msra.mxu0 0
    %1144 = vmatprep.subr.bf16.mxu0 0
    %1145 = vmatpush1.bf16.msra.mxu0 0
    %1146 = vmatprep.subr.bf16.mxu0 0
    %1147 = vmatpush1.bf16.msra.mxu0 0
    %1148 = vmatprep.subr.bf16.mxu0 0
    %1149 = vmatpush1.bf16.msra.mxu0 0
    %1150 = vmatprep.mubr.bf16.mxu0 0
    %1151 = vmatmul.mubr.bf16.gmra.mrb[0].mxu0 %v1110
    %v1152 = vpop.f32.mrb[0].mxu0
    %v1153 = vadd.f32 %v1095, %v1152
    %v1154 = vpop.f32.mrb[0].mxu0
    %v1155 = vpop.f32.mrb[0].mxu0
    %v1156 = vadd.f32 %v1095, %v1155
    %v1157 = vpop.f32.mrb[0].mxu0
    %1158 = vmatprep.mubr.bf16.mxu0 0
    %1159 = vmatmul.mubr.bf16.gmra.mrb[0].mxu0 %v1113
    %v1160 = vpop.f32.mrb[0].mxu0
    %v1161 = vadd.f32 %v1095, %v1160
    %v1162 = vpop.f32.mrb[0].mxu0
    %v1163 = vpop.f32.mrb[0].mxu0
    %v1164 = vadd.f32 %v1095, %v1163
    %v1165 = vpop.f32.mrb[0].mxu0
    %1166 = vmatprep.mubr.bf16.mxu0 0
    %1167 = vmatmul.mubr.bf16.gmra.mrb[0].mxu0 %v1116
    %v1168 = vpop.f32.mrb[0].mxu0
    %v1169 = vadd.f32 %v1095, %v1168
    %v1170 = vpop.f32.mrb[0].mxu0
    %v1171 = vpop.f32.mrb[0].mxu0
    %v1172 = vadd.f32 %v1095, %v1171
    %v1173 = vpop.f32.mrb[0].mxu0
    %1174 = vdwg.mxu0
    %v1175 = vmax.f32 %v1153, 0.0
    %v1176 = vmax.f32 %v1156, 0.0
    %v1177 = vmax.f32 %v1161, 0.0
    %v1178 = vmax.f32 %v1164, 0.0
    %v1179 = vmax.f32 %v1169, 0.0
    %v1180 = vmax.f32 %v1172, 0.0
    %v1181 = vsel %vm57, %v1175, 0.0
    %v1182 = vsel %vm57, %v1176, 0.0
    %v1183 = vadd.f32 %v1181, %v1182
    %v1184 = vsel %vm57, %v1177, 0.0
    %v1185 = vadd.f32 %v1183, %v1184
    %v1186 = vrot.slane %v1185, 4
    %v1187 = vadd.f32 %v1185, %v1186
    %v1188 = vrot.slane %v1187, 2
    %v1189 = vadd.f32 %v1187, %v1188
    %v1190 = vrot.slane %v1189, 1
    %v1191 = vadd.f32 %v1189, %v1190
    %v1192 = vsel %vm57, %v1178, 0.0
    %v1193 = vsel %vm57, %v1179, 0.0
    %v1194 = vadd.f32 %v1192, %v1193
    %v1195 = vsel %vm57, %v1180, 0.0
    %v1196 = vadd.f32 %v1194, %v1195
    %v1197 = vrot.slane %v1196, 4
    %v1198 = vadd.f32 %v1196, %v1197
    %v1199 = vrot.slane %v1198, 2
    %v1200 = vadd.f32 %v1198, %v1199
    %v1201 = vrot.slane %v1200, 1
    %v1202 = vadd.f32 %v1200, %v1201
    %vm1203 = vcmask 1040384
    %v1204 = vsel %vm1203, %v1191, %v1202
    %vm1205 = vcmask 123904
    %1206 = vst.msk [vmem:[#allocation2] sm:$0x3] %vm1205, %v1204
    // Predicated region
    $region30: #{tpu_custom_call.1} parent=1 // pred_check
      _
    $region31: #{tpu_custom_call.1} parent=1 // pred_check_branch
      %1208 = sbr.rel (0) target = $region33
    $region32: #{tpu_custom_call.1} parent=1 // pred_region
      %s1210 = ssub.s32 32, 32
      %1211 = vsyncadd [#allocation3], %s1210
      %s1213 = sshll.u32 [#allocation2], 4
      %s1214 = int_to_ptr.vmem [resolvable:$true] %s1213
      %1216 = dma.vmem_to_hbm [thread:$0]  %s1214, 32, %s7, [#allocation3]
    $region33: #{tpu_custom_call.1} parent=1 // pred_fallthru
      _
    // Predicated region
    $region34: #{tpu_custom_call.1} parent=1 // pred_check
      _
    $region35: #{tpu_custom_call.1} parent=1 // pred_check_branch
      %1218 = sbr.rel (0) target = $region37
    $region36: #{tpu_custom_call.1} parent=1 // pred_region
      %1219 = dma.done [#allocation3], 32
    $region37: #{tpu_custom_call.1} parent=1 // pred_fallthru
      _
    %1220 = vsyncpa [#allocation3], 1

</llo_original>
